<compile_context>
chip_gen: v7x
topology: tpu7x:2x2x1
jax: 0.10.0
libtpu: 0.0.40
codegen_flags: <defaults>
</compile_context>

<pallas_src>
import functools

import jax
import jax.numpy as jnp
from jax.experimental import pallas as pl
from jax.experimental.pallas import tpu as pltpu


def _bce_kernel(x_ref, t_ref, o_ref, *, rows, row_tile, blocks_per_split, need_mask):
    i = pl.program_id(1)  # reduction axis: row blocks within this split

    @pl.when(i == 0)
    def _():
        o_ref[...] = jnp.zeros_like(o_ref)

    x = x_ref[...].astype(jnp.float32)
    t = t_ref[...].astype(jnp.float32)

    # p = sigmoid(x);  BCE(p, t) = -(t*log(p) + (1-t)*log(1-p))
    # Single-softplus formulation (one exp + one log1p per element):
    #   softplus(x) = max(x, 0) + log1p(exp(-|x|))
    #   -log(p)     = softplus(-x) = softplus(x) - x
    #   -log(1-p)   = softplus(x)
    # PyTorch's binary_cross_entropy clamps each log term at -100 (i.e. each
    # negative-log term at +100) -- preserved exactly here.
    sp = jnp.maximum(x, 0.0) + jnp.log1p(jnp.exp(-jnp.abs(x)))
    neg_log_p = jnp.minimum(sp - x, 100.0)
    neg_log_1mp = jnp.minimum(sp, 100.0)
    per_elem = t * neg_log_p + (1.0 - t) * neg_log_1mp

    if need_mask:
        # Mask rows past the true row count (partial last block and/or phantom
        # blocks introduced by splitting the block range across cores).
        c = pl.program_id(0)
        row_start = (c * blocks_per_split + i) * row_tile
        row_ids = row_start + jax.lax.broadcasted_iota(jnp.int32, per_elem.shape, 0)
        per_elem = jnp.where(row_ids < rows, per_elem, 0.0)

    rt, cols = per_elem.shape
    if rt % 8 != 0:  # tiny-row corner case (rows < 8): pad to one sublane group
        pad = jnp.zeros((8 - rt % 8, cols), jnp.float32)
        per_elem = jnp.concatenate([per_elem, pad], axis=0)

    # Vector accumulator: pure VPU adds into an (8, cols) slab resident in the
    # output block; the cross-lane reduce + mean are deferred to the tiny
    # wrapper-side combine (better accuracy, no per-step XLU/scalar RMW).
    o_ref[...] += per_elem.reshape(-1, 8, cols).sum(axis=0)[None]


def _choose_row_tile(rows, cols, itemsize, *, max_block_bytes, max_rows):
    """Largest multiple-of-8 row tile under the per-block VMEM budget (<= rows)."""
    if rows < 8:
        return rows  # full-dim block: exempt from the (8, 128) divisibility rule
    bytes_per_row = max(cols, 1) * itemsize
    rt = max_block_bytes // bytes_per_row
    rt = min(rt, max_rows, rows)
    rt = max(8, (rt // 8) * 8)
    return int(rt)


def bce_loss(v2g_sim_matrix, l2g_sim_matrix, *, num_splits=2, max_row_tile=1024,
             max_block_bytes=2 * 1024 * 1024):
    """sigmoid(v2g) then BCE (mean) against l2g, in a single Pallas TPU kernel.

    Inputs may be f32 or bf16 (bf16 halves HBM traffic; the kernel upcasts
    in-register after the load).  The conservative 2 MiB/block budget means
    <= ~8 MiB of double-buffered input tiles, which fits the scoped-VMEM
    defaults of v5e/v6e (16-32 MiB) and v7x (32 MiB scoped / 64 MiB physical).
    """
    assert v2g_sim_matrix.shape == l2g_sim_matrix.shape
    assert v2g_sim_matrix.ndim == 2
    rows, cols = v2g_sim_matrix.shape
    itemsize = max(v2g_sim_matrix.dtype.itemsize, l2g_sim_matrix.dtype.itemsize)
    # TODO(synk): also tile the column dimension for extremely wide matrices
    # (cols * 8 * itemsize > max_block_bytes); full-cols row blocks assumed here.

    row_tile = _choose_row_tile(rows, cols, itemsize,
                                max_block_bytes=max_block_bytes,
                                max_rows=max_row_tile)
    blocks_total = pl.cdiv(rows, row_tile)
    num_splits = max(1, min(num_splits, blocks_total))
    blocks_per_split = pl.cdiv(blocks_total, num_splits)
    covered_rows = num_splits * blocks_per_split * row_tile
    need_mask = covered_rows != rows

    if num_splits * blocks_per_split == blocks_total:
        def in_map(c, i):
            return (c * blocks_per_split + i, 0)
    else:
        # Phantom trailing blocks on the last split re-read the final real block
        # (kept in-bounds); their contribution is masked to zero in the kernel.
        def in_map(c, i):
            return (jnp.minimum(c * blocks_per_split + i, blocks_total - 1), 0)

    kernel = functools.partial(
        _bce_kernel, rows=rows, row_tile=row_tile,
        blocks_per_split=blocks_per_split, need_mask=need_mask)

    partials = pl.pallas_call(
        kernel,
        out_shape=jax.ShapeDtypeStruct((num_splits, 8, cols), jnp.float32),
        grid_spec=pltpu.PrefetchScalarGridSpec(
            num_scalar_prefetch=0,
            grid=(num_splits, blocks_per_split),
            in_specs=[
                pl.BlockSpec((row_tile, cols), in_map),
                pl.BlockSpec((row_tile, cols), in_map),
            ],
            out_specs=pl.BlockSpec((1, 8, cols), lambda c, i: (c, 0, 0)),
        ),
        compiler_params=pltpu.CompilerParams(
            dimension_semantics=("parallel", "arbitrary"),
        ),
    )(v2g_sim_matrix, l2g_sim_matrix)

    # Final cross-lane / cross-core combine + mean (tiny, done once).
    return jnp.sum(partials) / jnp.float32(rows * cols)


def _bce_ref(x, t):
    x = x.astype(jnp.float32)
    t = t.astype(jnp.float32)
    p = jax.nn.sigmoid(x)
    log_p = jnp.maximum(jnp.log(p), -100.0)
    log_1mp = jnp.maximum(jnp.log1p(-p), -100.0)
    return jnp.mean(-(t * log_p + (1.0 - t) * log_1mp))


if __name__ == "__main__":
    key = jax.random.PRNGKey(0)
    k1, k2, k3, k4, k5, k6 = jax.random.split(key, 6)

    # 1) Primary small case (typical video-to-global / language-to-global sims).
    v2g = jax.random.normal(k1, (16, 128), dtype=jnp.float32)
    l2g = jax.random.uniform(k2, (16, 128), dtype=jnp.float32)  # targets in [0, 1]
    loss = bce_loss(v2g, l2g)
    jax.block_until_ready(loss)
    assert jnp.allclose(loss, _bce_ref(v2g, l2g), atol=1e-5, rtol=1e-5), loss

    # 2) bf16 logits + forced-small tiles: exercises the 2-way TensorCore split,
    #    phantom-block clamping and row masking.
    v2g2 = jax.random.normal(k3, (48, 256), dtype=jnp.bfloat16)
    l2g2 = jax.random.uniform(k4, (48, 256), dtype=jnp.float32)
    loss2 = bce_loss(v2g2, l2g2, max_row_tile=16)
    jax.block_until_ready(loss2)
    assert jnp.allclose(loss2, _bce_ref(v2g2, l2g2), atol=1e-5, rtol=1e-5), loss2

    # 3) Ragged rows (not a multiple of 8): partial final block + mask.
    v2g3 = jax.random.normal(k5, (20, 192), dtype=jnp.float32)
    l2g3 = jax.random.uniform(k6, (20, 192), dtype=jnp.float32)
    loss3 = bce_loss(v2g3, l2g3)
    jax.block_until_ready(loss3)
    assert jnp.allclose(loss3, _bce_ref(v2g3, l2g3), atol=1e-5, rtol=1e-5), loss3

    print("KERNEL_OK")
</pallas_src>

<mosaic_0001>
module attributes {stable_mosaic.version = 11 : i64} {
  func.func @_bce_kernel(%arg0: i32, %arg1: i32, %arg2: memref<16x128xf32, #tpu.memory_space<vmem>>, %arg3: memref<16x128xf32, #tpu.memory_space<vmem>>, %arg4: memref<1x8x128xf32, #tpu.memory_space<vmem>>) attributes {dimension_semantics = [#tpu.dimension_semantics<parallel>, #tpu.dimension_semantics<arbitrary>], iteration_bounds = array<i64: 1, 1>, scalar_prefetch = 0 : i64, scratch_operands = 0 : i64, tpu.core_type = #tpu.core_type<tc>, window_params = [{transform_indices = @transform_0, window_bounds = array<i64: 16, 128>}, {transform_indices = @transform_1, window_bounds = array<i64: 16, 128>}, {transform_indices = @transform_2, window_bounds = array<i64: 1, 8, 128>}]} {
    %c0_i32 = arith.constant 0 : i32
    %0 = arith.cmpi eq, %arg1, %c0_i32 : i32
    %1 = arith.extui %0 : i1 to i32
    %c0_i32_0 = arith.constant 0 : i32
    %2 = arith.cmpi ne, %1, %c0_i32_0 : i32
    scf.if %2 {
      %cst_15 = arith.constant 0.000000e+00 : f32
      %29 = vector.broadcast %cst_15 : f32 to vector<1x8x128xf32>
      %c0_16 = arith.constant 0 : index
      %c0_17 = arith.constant 0 : index
      %c0_18 = arith.constant 0 : index
      %30 = vector.load %arg4[%c0_16, %c0_17, %c0_18] : memref<1x8x128xf32, #tpu.memory_space<vmem>>, vector<1x8x128xf32>
      tpu.vector_store %arg4[%c0_16, %c0_17, %c0_18], %29 {strides = array<i32>} : memref<1x8x128xf32, #tpu.memory_space<vmem>>, vector<1x8x128xf32>,
    } else {
    }
    %c0 = arith.constant 0 : index
    %c0_1 = arith.constant 0 : index
    %3 = vector.load %arg2[%c0, %c0_1] : memref<16x128xf32, #tpu.memory_space<vmem>>, vector<16x128xf32>
    %c0_2 = arith.constant 0 : index
    %c0_3 = arith.constant 0 : index
    %4 = vector.load %arg3[%c0_2, %c0_3] : memref<16x128xf32, #tpu.memory_space<vmem>>, vector<16x128xf32>
    %cst = arith.constant 0.000000e+00 : f32
    %5 = vector.broadcast %cst : f32 to vector<16x128xf32>
    %6 = arith.maximumf %3, %5 : vector<16x128xf32>
    %7 = math.absf %3 : vector<16x128xf32>
    %cst_4 = arith.constant 0.000000e+00 : f32
    %8 = vector.broadcast %cst_4 : f32 to vector<16x128xf32>
    %9 = arith.subf %8, %7 : vector<16x128xf32>
    %10 = math.exp %9 : vector<16x128xf32>
    %11 = math.log1p %10 : vector<16x128xf32>
    %12 = arith.addf %6, %11 : vector<16x128xf32>
    %13 = arith.subf %12, %3 : vector<16x128xf32>
    %cst_5 = arith.constant 1.000000e+02 : f32
    %14 = vector.broadcast %cst_5 : f32 to vector<16x128xf32>
    %15 = arith.minimumf %13, %14 : vector<16x128xf32>
    %cst_6 = arith.constant 1.000000e+02 : f32
    %16 = vector.broadcast %cst_6 : f32 to vector<16x128xf32>
    %17 = arith.minimumf %12, %16 : vector<16x128xf32>
    %18 = arith.mulf %4, %15 : vector<16x128xf32>
    %cst_7 = arith.constant 1.000000e+00 : f32
    %19 = vector.broadcast %cst_7 : f32 to vector<16x128xf32>
    %20 = arith.subf %19, %4 : vector<16x128xf32>
    %21 = arith.mulf %20, %17 : vector<16x128xf32>
    %22 = arith.addf %18, %21 : vector<16x128xf32>
    %c0_8 = arith.constant 0 : index
    %c0_9 = arith.constant 0 : index
    %c0_10 = arith.constant 0 : index
    %23 = vector.load %arg4[%c0_8, %c0_9, %c0_10] : memref<1x8x128xf32, #tpu.memory_space<vmem>>, vector<1x8x128xf32>
    %24 = vector.shape_cast %22 : vector<16x128xf32> to vector<2x8x128xf32>
    %cst_11 = arith.constant dense<0.000000e+00> : vector<8x128xf32>
    %25 = vector.multi_reduction <add>, %24, %cst_11 [0] : vector<2x8x128xf32> to vector<8x128xf32>
    %26 = vector.shape_cast %25 : vector<8x128xf32> to vector<1x8x128xf32>
    %27 = arith.addf %23, %26 : vector<1x8x128xf32>
    %c0_12 = arith.constant 0 : index
    %c0_13 = arith.constant 0 : index
    %c0_14 = arith.constant 0 : index
    %28 = vector.load %arg4[%c0_12, %c0_13, %c0_14] : memref<1x8x128xf32, #tpu.memory_space<vmem>>, vector<1x8x128xf32>
    tpu.vector_store %arg4[%c0_12, %c0_13, %c0_14], %27 {strides = array<i32>} : memref<1x8x128xf32, #tpu.memory_space<vmem>>, vector<1x8x128xf32>,
    return
  }
  func.func @transform_0(%arg0: i32, %arg1: i32) -> (i32, i32) {
    %c1_i32 = arith.constant 1 : i32
    %0 = arith.muli %arg0, %c1_i32 : i32
    %1 = arith.addi %0, %arg1 : i32
    %c0_i32 = arith.constant 0 : i32
    %c0_i32_0 = arith.constant 0 : i32
    return %1, %c0_i32 : i32, i32
  }
  func.func @transform_1(%arg0: i32, %arg1: i32) -> (i32, i32) {
    %c1_i32 = arith.constant 1 : i32
    %0 = arith.muli %arg0, %c1_i32 : i32
    %1 = arith.addi %0, %arg1 : i32
    %c0_i32 = arith.constant 0 : i32
    %c0_i32_0 = arith.constant 0 : i32
    return %1, %c0_i32 : i32, i32
  }
  func.func @transform_2(%arg0: i32, %arg1: i32) -> (i32, i32, i32) {
    %c0_i32 = arith.constant 0 : i32
    %c0_i32_0 = arith.constant 0 : i32
    %c0_i32_1 = arith.constant 0 : i32
    return %arg0, %c0_i32, %c0_i32_0 : i32, i32, i32
  }
}

</mosaic_0001>

<llo_original>
// kernel: tpu_custom_call.1
$region0: #{tpu_custom_call.1}
  #allocation0 [shape = 'u32[]', space=smem, size = 0x4, offset = 0x4, fixed_abs, tag = 'smem constant byte address 0x4 - core index']
  #allocation1 [shape = 'u32[144,128]{1,0:T(1,128)}', space=vmem, size = 0x12000, scoped, tag = 'internal scratch']
  %s0 = inlined_call_operand.hbm [shape: f32[16,128], index: 0, kind: input, shape index: {}]
  %s1 = inlined_call_operand.hbm [shape: f32[16,128], index: 1, kind: input, shape index: {}]
  %s2 = inlined_call_operand.hbm [shape: f32[1,8,128], index: 2, kind: output, shape index: {}]
  %s3 = sld [smem:[#allocation0]]
  $region30: #{tpu_custom_call.1} parent=0
    _
  %s5 = ssub.s32 1, %s3
  %s6 = scalar_select 0, %s5, %s3
  $region1: #{tpu_custom_call.1} parent=0
    #allocation2 [shape = 'u8[8192]{0}', space=vmem, size = 0x2000, scoped, tag = 'input window, operand 0, single buffered']
    #allocation3 [shape = 's32[1]{0}', space=sflag, size = 0x4, scoped, tag = 'scoped memory for tpu_custom_call.1']
    #allocation4 [shape = 's32[1]{0}', space=sflag, size = 0x4, scoped, tag = 'scoped memory for tpu_custom_call.1']
    #allocation5 [shape = 'u8[8192]{0}', space=vmem, size = 0x2000, scoped, tag = 'input window, operand 1, single buffered']
    #allocation6 [shape = 's32[1]{0}', space=sflag, size = 0x4, scoped, tag = 'scoped memory for tpu_custom_call.1']
    #allocation7 [shape = 'u8[4096]{0}', space=vmem, size = 0x1000, scoped, tag = 'output window, operand 0, single buffered']
    %7 = vsyncpa [#allocation3], 0
    %8 = vsyncpa [#allocation6], 0
    %9 = vsyncpa [#allocation4], 0
    // Predicated region
    $region2: #{tpu_custom_call.1} parent=1 // pred_check
      _
    $region3: #{tpu_custom_call.1} parent=1 // pred_check_branch
      %11 = sbr.rel (0) target = $region5
    $region4: #{tpu_custom_call.1} parent=1 // pred_region
      %s12 = sadd.s32 0, 0
      %s13 = smul.u32 2, %s12
      %s15 = ssub.s32 256, 256
      %16 = vsyncadd [#allocation3], %s15
      %s17 = smul.addr %s13, 128
      %s18 = scalar_lea.hbm %s0, %s17
      %s19 = sshll.u32 [#allocation2], 4
      %s20 = int_to_ptr.vmem [resolvable:$true] %s19
      %25 = dma.hbm_to_vmem [thread:$0]  %s18, 256, %s20, [#allocation3], 128, 128, 8
    $region5: #{tpu_custom_call.1} parent=1 // pred_fallthru
      _
    // Predicated region
    $region6: #{tpu_custom_call.1} parent=1 // pred_check
      _
    $region7: #{tpu_custom_call.1} parent=1 // pred_check_branch
      %27 = sbr.rel (0) target = $region9
    $region8: #{tpu_custom_call.1} parent=1 // pred_region
      %s28 = sadd.s32 0, 0
      %s29 = smul.u32 2, %s28
      %s31 = ssub.s32 256, 256
      %32 = vsyncadd [#allocation6], %s31
      %s33 = smul.addr %s29, 128
      %s34 = scalar_lea.hbm %s1, %s33
      %s35 = sshll.u32 [#allocation5], 4
      %s36 = int_to_ptr.vmem [resolvable:$true] %s35
      %41 = dma.hbm_to_vmem [thread:$0]  %s34, 256, %s36, [#allocation6], 128, 128, 8
    $region9: #{tpu_custom_call.1} parent=1 // pred_fallthru
      _
    // Predicated region
    $region10: #{tpu_custom_call.1} parent=1 // pred_check
      _
    $region11: #{tpu_custom_call.1} parent=1 // pred_check_branch
      %43 = sbr.rel (0) target = $region13
    $region12: #{tpu_custom_call.1} parent=1 // pred_region
      %44 = dma.done [#allocation3], 256
    $region13: #{tpu_custom_call.1} parent=1 // pred_fallthru
      _
    // Predicated region
    $region14: #{tpu_custom_call.1} parent=1 // pred_check
      _
    $region15: #{tpu_custom_call.1} parent=1 // pred_check_branch
      %46 = sbr.rel (0) target = $region17
    $region16: #{tpu_custom_call.1} parent=1 // pred_region
      %47 = dma.done [#allocation6], 256
    $region17: #{tpu_custom_call.1} parent=1 // pred_fallthru
      _
    %s48 = sadd.s32 0, 0
    %s49 = smul.u32 2, %s48
    %s50 = sadd.s32 0, 0
    %s51 = smul.u32 2, %s50
    %p52 = scmp.eq.s32.totalorder 0, 0
    // Predicated region
    $region18: #{tpu_custom_call.1} parent=1 // pred_check
      %p53 = pneg %p52
    $region19: #{tpu_custom_call.1} parent=1 // pred_check_branch
      %55 = sbr.rel (%p53) target = $region21
    $region20: #{tpu_custom_call.1} parent=1 // pred_region
      %56 = vst [vmem:[#allocation7] sm:$0xff] 0.0
    $region21: #{tpu_custom_call.1} parent=1 // pred_fallthru
      _
    %v57 = vld [vmem:[#allocation2] sm:$0xff]
    %v58 = vld [vmem:[#allocation2 + $0x8] sm:$0xff]
    %v59 = vld [vmem:[#allocation5] sm:$0xff]
    %v60 = vld [vmem:[#allocation5 + $0x8] sm:$0xff]
    %v61 = vmax.f32 %v57, 0.0
    %v62 = vmax.f32 %v58, 0.0
    %v63 = vand.u32 2147483647, %v57
    %v64 = vand.u32 2147483647, %v58
    %v65 = vsub.f32 0.0, %v63
    %v66 = vsub.f32 0.0, %v64
    %v67 = vmul.f32 %v65, 1.442695
    %v68 = vpow.pop %v67
    %v69 = vmul.f32 %v66, 1.442695
    %v70 = vpow.pop %v69
    %v71 = vadd.f32 %v68, 1.0
    %v72 = vlog2.pop %v71
    %v73 = vmul.f32 %v72, 0.6931472
    %v74 = vmul.f32 -0.5, %v68
    %v75 = vadd.f32 %v74, 1.0
    %v76 = vmul.f32 %v75, %v68
    %v77 = vand.u32 2147483647, %v68
    %vm78 = vcmp.lt.f32.partialorder %v77, 0.0004427343
    %v79 = vsel %vm78, %v76, %v73
    %v80 = vadd.f32 %v70, 1.0
    %v81 = vlog2.pop %v80
    %v82 = vmul.f32 %v81, 0.6931472
    %v83 = vmul.f32 -0.5, %v70
    %v84 = vadd.f32 %v83, 1.0
    %v85 = vmul.f32 %v84, %v70
    %v86 = vand.u32 2147483647, %v70
    %vm87 = vcmp.lt.f32.partialorder %v86, 0.0004427343
    %v88 = vsel %vm87, %v85, %v82
    %v89 = vadd.f32 %v61, %v79
    %v90 = vadd.f32 %v62, %v88
    %v91 = vsub.f32 %v89, %v57
    %v92 = vsub.f32 %v90, %v58
    %v93 = vmin.f32 %v91, 100.0
    %v94 = vmin.f32 %v92, 100.0
    %v95 = vmin.f32 %v89, 100.0
    %v96 = vmin.f32 %v90, 100.0
    %v97 = vmul.f32 %v59, %v93
    %v98 = vmul.f32 %v60, %v94
    %v99 = vsub.f32 1.0, %v59
    %v100 = vsub.f32 1.0, %v60
    %v101 = vmul.f32 %v99, %v95
    %v102 = vmul.f32 %v100, %v96
    %v103 = vadd.f32 %v97, %v101
    %v104 = vadd.f32 %v98, %v102
    %v105 = vld [vmem:[#allocation7] sm:$0xff]
    %v106 = vadd.f32 %v103, %v104
    %v107 = vadd.f32 %v105, %v106
    %108 = vst [vmem:[#allocation7] sm:$0xff] %v107
    // Predicated region
    $region22: #{tpu_custom_call.1} parent=1 // pred_check
      _
    $region23: #{tpu_custom_call.1} parent=1 // pred_check_branch
      %110 = sbr.rel (0) target = $region25
    $region24: #{tpu_custom_call.1} parent=1 // pred_region
      %s112 = ssub.s32 128, 128
      %113 = vsyncadd [#allocation4], %s112
      %s115 = sshll.u32 [#allocation7], 4
      %s116 = int_to_ptr.vmem [resolvable:$true] %s115
      %118 = dma.vmem_to_hbm [thread:$0]  %s116, 128, %s2, [#allocation4]
    $region25: #{tpu_custom_call.1} parent=1 // pred_fallthru
      _
    // Predicated region
    $region26: #{tpu_custom_call.1} parent=1 // pred_check
      _
    $region27: #{tpu_custom_call.1} parent=1 // pred_check_branch
      %120 = sbr.rel (0) target = $region29
    $region28: #{tpu_custom_call.1} parent=1 // pred_region
      %121 = dma.done [#allocation4], 128
    $region29: #{tpu_custom_call.1} parent=1 // pred_fallthru
      _
    %122 = vsyncpa [#allocation3], 1
    %123 = vsyncpa [#allocation6], 1
    %124 = vsyncpa [#allocation4], 1

</llo_original>
